<compile_context>
chip_gen: v7x
topology: tpu7x:2x2x1
jax: 0.10.0
libtpu: 0.0.40
codegen_flags: <defaults>
</compile_context>

<pallas_src>
import jax
import jax.numpy as jnp
from jax.experimental import pallas as pl
from jax.experimental.pallas import tpu as pltpu


def _mish_kernel(x_ref, o_ref):
    x = x_ref[...].astype(jnp.float32)
    # mish(x) = x * tanh(softplus(x)).  With u = exp(x):
    #   tanh(ln(1 + u)) = ((1+u)^2 - 1) / ((1+u)^2 + 1) = u*(u+2) / (u*(u+2)+2)
    # min(x, 20) prevents exp overflow; for x > 20 the ratio is 1.0 within
    # f32 ulp, matching F.softplus's threshold=20 behavior.
    u = jnp.exp(jnp.minimum(x, 20.0))
    num = u * (u + 2.0)
    y = x * (num / (num + 2.0))
    o_ref[...] = y.astype(o_ref.dtype)


def mish_naive_pallas(x, *, target_block_bytes=2 * 1024 * 1024):
    orig_shape = x.shape
    orig_dtype = x.dtype
    n = x.size
    itemsize = jnp.dtype(orig_dtype).itemsize

    flat = jnp.ravel(x)

    # Lane-dense slab: wide last dim (1024) for large unmasked vector stores;
    # fall back to 128 lanes for tiny inputs.  Pad only when strictly
    # necessary, and only by < width elements.
    width = 1024 if n >= 1024 else 128
    n_pad = pl.cdiv(n, width) * width
    padded = n_pad != n
    if padded:
        flat = jnp.pad(flat, (0, n_pad - n))
    rows = n_pad // width
    x2d = flat.reshape(rows, width)

    # Pick block rows targeting ~2 MiB per block; keep the sublane dim a
    # multiple of 8 (or the full extent) per the (8, 128) block constraint.
    # Partial final blocks are masked by Pallas automatically.
    if rows <= 8:
        block_rows = rows  # full-extent block, single grid step
    else:
        block_rows = max(8, target_block_bytes // (width * itemsize))
        block_rows = (min(block_rows, rows) // 8) * 8
    grid = (pl.cdiv(rows, block_rows),)

    out2d = pl.pallas_call(
        _mish_kernel,
        out_shape=jax.ShapeDtypeStruct((rows, width), orig_dtype),
        grid_spec=pltpu.PrefetchScalarGridSpec(
            num_scalar_prefetch=0,
            grid=grid,
            in_specs=[pl.BlockSpec((block_rows, width), lambda i: (i, 0))],
            out_specs=pl.BlockSpec((block_rows, width), lambda i: (i, 0)),
        ),
        compiler_params=pltpu.CompilerParams(
            dimension_semantics=("parallel",),  # lets v7x shard the loop over its 2 TCs
        ),
        cost_estimate=pl.CostEstimate(
            flops=7 * n,
            transcendentals=n,
            bytes_accessed=2 * n * itemsize,
        ),
    )(x2d)

    if padded:
        return out2d.reshape(-1)[:n].reshape(orig_shape)
    return out2d.reshape(orig_shape)


def mish_naive_ref(x):
    xf = x.astype(jnp.float32)
    sp = jnp.where(xf > 20.0, xf, jnp.log1p(jnp.exp(jnp.minimum(xf, 20.0))))
    return (xf * jnp.tanh(sp)).astype(x.dtype)


if __name__ == "__main__":
    key = jax.random.PRNGKey(0)

    # Primary check: NCHW tensor, size a multiple of the slab width (no pad path).
    x = jax.random.normal(key, (2, 4, 16, 16), dtype=jnp.float32) * 3.0
    out = mish_naive_pallas(x)
    jax.block_until_ready(out)
    ref = mish_naive_ref(x)
    assert out.shape == x.shape and out.dtype == x.dtype
    assert jnp.allclose(out, ref, atol=1e-5, rtol=1e-5), "mismatch vs reference"

    # Secondary check: ragged size exercising the minimal-pad path.
    key2 = jax.random.PRNGKey(0)
    x2 = jax.random.normal(key2, (3, 5, 7, 11), dtype=jnp.float32) * 4.0
    out2 = mish_naive_pallas(x2)
    jax.block_until_ready(out2)
    ref2 = mish_naive_ref(x2)
    assert out2.shape == x2.shape and out2.dtype == x2.dtype
    assert jnp.allclose(out2, ref2, atol=1e-5, rtol=1e-5), "mismatch vs reference (padded path)"

    print("KERNEL_OK")
</pallas_src>

<mosaic_0001>
module attributes {stable_mosaic.version = 11 : i64} {
  func.func @_mish_kernel(%arg0: i32, %arg1: memref<2x1024xf32, #tpu.memory_space<vmem>>, %arg2: memref<2x1024xf32, #tpu.memory_space<vmem>>) attributes {dimension_semantics = [#tpu.dimension_semantics<parallel>], iteration_bounds = array<i64: 1>, scalar_prefetch = 0 : i64, scratch_operands = 0 : i64, tpu.core_type = #tpu.core_type<tc>, window_params = [{transform_indices = @transform_0, window_bounds = array<i64: 2, 1024>}, {transform_indices = @transform_1, window_bounds = array<i64: 2, 1024>}]} {
    %c0 = arith.constant 0 : index
    %c0_0 = arith.constant 0 : index
    %0 = vector.load %arg1[%c0, %c0_0] : memref<2x1024xf32, #tpu.memory_space<vmem>>, vector<2x1024xf32>
    %cst = arith.constant 2.000000e+01 : f32
    %1 = vector.broadcast %cst : f32 to vector<2x1024xf32>
    %2 = arith.minimumf %0, %1 : vector<2x1024xf32>
    %3 = math.exp %2 : vector<2x1024xf32>
    %cst_1 = arith.constant 2.000000e+00 : f32
    %4 = vector.broadcast %cst_1 : f32 to vector<2x1024xf32>
    %5 = arith.addf %3, %4 : vector<2x1024xf32>
    %6 = arith.mulf %3, %5 : vector<2x1024xf32>
    %cst_2 = arith.constant 2.000000e+00 : f32
    %7 = vector.broadcast %cst_2 : f32 to vector<2x1024xf32>
    %8 = arith.addf %6, %7 : vector<2x1024xf32>
    %9 = arith.divf %6, %8 : vector<2x1024xf32>
    %10 = arith.mulf %0, %9 : vector<2x1024xf32>
    %c0_3 = arith.constant 0 : index
    %c0_4 = arith.constant 0 : index
    %11 = vector.load %arg2[%c0_3, %c0_4] : memref<2x1024xf32, #tpu.memory_space<vmem>>, vector<2x1024xf32>
    tpu.vector_store %arg2[%c0_3, %c0_4], %10 {strides = array<i32>} : memref<2x1024xf32, #tpu.memory_space<vmem>>, vector<2x1024xf32>,
    return
  }
  func.func @transform_0(%arg0: i32) -> (i32, i32) {
    %c0_i32 = arith.constant 0 : i32
    %c0_i32_0 = arith.constant 0 : i32
    return %arg0, %c0_i32 : i32, i32
  }
  func.func @transform_1(%arg0: i32) -> (i32, i32) {
    %c0_i32 = arith.constant 0 : i32
    %c0_i32_0 = arith.constant 0 : i32
    return %arg0, %c0_i32 : i32, i32
  }
}

</mosaic_0001>

<llo_original>
// kernel: tpu_custom_call.1
$region0: #{tpu_custom_call.1}
  #allocation0 [shape = 'u32[]', space=smem, size = 0x4, offset = 0x4, fixed_abs, tag = 'smem constant byte address 0x4 - core index']
  #allocation1 [shape = 'u32[144,128]{1,0:T(1,128)}', space=vmem, size = 0x12000, scoped, tag = 'internal scratch']
  %s0 = inlined_call_operand.hbm [shape: f32[2,1024], index: 0, kind: input, shape index: {}]
  %s1 = inlined_call_operand.hbm [shape: f32[2,1024], index: 1, kind: output, shape index: {}]
  %s2 = sld [smem:[#allocation0]]
  $region18: #{tpu_custom_call.1} parent=0
    _
  %s4 = ssub.s32 1, %s2
  %s5 = scalar_select 0, %s4, %s2
  $region1: #{tpu_custom_call.1} parent=0
    #allocation2 [shape = 'u8[8192]{0}', space=vmem, size = 0x2000, scoped, tag = 'input window, operand 0, single buffered']
    #allocation3 [shape = 's32[1]{0}', space=sflag, size = 0x4, scoped, tag = 'scoped memory for tpu_custom_call.1']
    #allocation4 [shape = 's32[1]{0}', space=sflag, size = 0x4, scoped, tag = 'scoped memory for tpu_custom_call.1']
    #allocation5 [shape = 'u8[8192]{0}', space=vmem, size = 0x2000, scoped, tag = 'output window, operand 0, single buffered']
    %6 = vsyncpa [#allocation3], 0
    %7 = vsyncpa [#allocation4], 0
    // Predicated region
    $region2: #{tpu_custom_call.1} parent=1 // pred_check
      _
    $region3: #{tpu_custom_call.1} parent=1 // pred_check_branch
      %9 = sbr.rel (0) target = $region5
    $region4: #{tpu_custom_call.1} parent=1 // pred_region
      %s11 = ssub.s32 256, 256
      %12 = vsyncadd [#allocation3], %s11
      %s14 = sshll.u32 [#allocation2], 4
      %s15 = int_to_ptr.vmem [resolvable:$true] %s14
      %17 = dma.hbm_to_vmem [thread:$0]  %s0, 256, %s15, [#allocation3]
    $region5: #{tpu_custom_call.1} parent=1 // pred_fallthru
      _
    // Predicated region
    $region6: #{tpu_custom_call.1} parent=1 // pred_check
      _
    $region7: #{tpu_custom_call.1} parent=1 // pred_check_branch
      %19 = sbr.rel (0) target = $region9
    $region8: #{tpu_custom_call.1} parent=1 // pred_region
      %20 = dma.done [#allocation3], 256
    $region9: #{tpu_custom_call.1} parent=1 // pred_fallthru
      _
    %v21 = vld [vmem:[#allocation2] sm:$0xff]
    %v22 = vld [vmem:[#allocation2 + $0x8] sm:$0xff]
    %v23 = vmin.f32 %v21, 20.0
    %v24 = vmin.f32 %v22, 20.0
    %v25 = vmul.f32 %v23, 1.442695
    %v26 = vpow.pop %v25
    %v27 = vmul.f32 %v24, 1.442695
    %v28 = vpow.pop %v27
    %v29 = vadd.f32 %v26, 2.0
    %v30 = vadd.f32 %v28, 2.0
    %v31 = vmul.f32 %v26, %v29
    %v32 = vmul.f32 %v28, %v30
    %v33 = vadd.f32 %v31, 2.0
    %v34 = vadd.f32 %v32, 2.0
    %v35 = vrcp.pop %v33
    %v36 = vmul.f32 %v31, %v35
    %v37 = vrcp.pop %v34
    %v38 = vmul.f32 %v32, %v37
    %v39 = vmul.f32 %v21, %v36
    %v40 = vmul.f32 %v22, %v38
    %41 = vst [vmem:[#allocation5] sm:$0xff] %v39
    %42 = vst [vmem:[#allocation5 + $0x8] sm:$0xff] %v40
    // Predicated region
    $region10: #{tpu_custom_call.1} parent=1 // pred_check
      _
    $region11: #{tpu_custom_call.1} parent=1 // pred_check_branch
      %44 = sbr.rel (0) target = $region13
    $region12: #{tpu_custom_call.1} parent=1 // pred_region
      %s46 = ssub.s32 256, 256
      %47 = vsyncadd [#allocation4], %s46
      %s49 = sshll.u32 [#allocation5], 4
      %s50 = int_to_ptr.vmem [resolvable:$true] %s49
      %52 = dma.vmem_to_hbm [thread:$0]  %s50, 256, %s1, [#allocation4]
    $region13: #{tpu_custom_call.1} parent=1 // pred_fallthru
      _
    // Predicated region
    $region14: #{tpu_custom_call.1} parent=1 // pred_check
      _
    $region15: #{tpu_custom_call.1} parent=1 // pred_check_branch
      %54 = sbr.rel (0) target = $region17
    $region16: #{tpu_custom_call.1} parent=1 // pred_region
      %55 = dma.done [#allocation4], 256
    $region17: #{tpu_custom_call.1} parent=1 // pred_fallthru
      _
    %56 = vsyncpa [#allocation3], 1
    %57 = vsyncpa [#allocation4], 1

</llo_original>
